<compile_context>
chip_gen: v5e
topology: v5e:2x2
jax: 0.10.0
libtpu: 0.0.40
codegen_flags: <defaults>
</compile_context>

<pallas_src>
import jax
import jax.numpy as jnp
from jax.experimental import pallas as pl
from jax.experimental.pallas import tpu as pltpu

_LN_EPS = 1e-5


def _round_up(x, m):
    return (x + m - 1) // m * m


def _seq_hint_kernel(s_ref, t_ref, m_ref, out_ref):
    """One row tile: masked row-sum of (LN(s) - LN(t))**2 per column,
    accumulated into a resident (1, 8, D) f32 output block."""

    def ln_hat(x):  # LayerNorm without the affine part (beta cancels, gamma folded out)
        x = x.astype(jnp.float32)
        mu = jnp.mean(x, axis=-1, keepdims=True)
        xc = x - mu
        var = jnp.mean(xc * xc, axis=-1, keepdims=True)
        return xc * jax.lax.rsqrt(var + _LN_EPS)

    diff = ln_hat(s_ref[...]) - ln_hat(t_ref[...])               # (R, D)
    sq = diff * diff * m_ref[...].astype(jnp.float32)            # masked SSE terms

    rows, d = sq.shape
    # Sublane-group fold: (R, D) -> (R/8, 8, D) is layout-preserving, the sum
    # over axis 0 is pure VPU adds (no cross-lane/XLU reduce).
    partial = sq.reshape(rows // 8, 8, d).sum(axis=0)            # (8, D)

    @pl.when(pl.program_id(1) == 0)
    def _():
        out_ref[...] = jnp.zeros_like(out_ref)

    out_ref[...] += partial[None, :, :]


def _masked_normed_mse(s, t, row_valid, gamma, *, tile_rows=1024,
                       num_core_splits=2,
                       vmem_stream_budget=32 * 1024 * 1024):
    """mean over valid rows/elements of (LayerNorm(s) - LayerNorm(t))**2.

    s, t: (N, D) float arrays (kept in their native dtype on the stream).
    row_valid: (N,) bool.  gamma: (D,).  Returns a float32 scalar.
    """
    n, d = s.shape
    assert t.shape == (n, d) and row_valid.shape == (n,)
    count = jnp.sum(row_valid.astype(jnp.float32))

    itemsize = max(s.dtype.itemsize, t.dtype.itemsize)
    # 2 row streams (s, t) x 2 pipeline buffers each must fit the budget.
    max_rows = max(8, (vmem_stream_budget // (4 * d * itemsize)) // 8 * 8)
    rows_per_split = -(-n // num_core_splits)
    tile_rows = int(min(tile_rows, max_rows, _round_up(rows_per_split, 8)))
    tile_rows = _round_up(max(tile_rows, 8), 8)

    chunk = num_core_splits * tile_rows
    n_pad = _round_up(n, chunk)
    tiles_per_split = n_pad // chunk
    pad = n_pad - n
    if pad:
        # Padded rows get row_valid=False (jnp.pad -> False) so they add 0 SSE;
        # padded s/t rows are zeros, so LN is finite (0 * rsqrt(eps)).
        s = jnp.pad(s, ((0, pad), (0, 0)))
        t = jnp.pad(t, ((0, pad), (0, 0)))
        row_valid = jnp.pad(row_valid, ((0, pad),))

    m = row_valid.astype(jnp.float32).reshape(n_pad, 1)

    row_map = lambda c, i: (c * tiles_per_split + i, 0)
    row_spec = pl.BlockSpec((tile_rows, d), row_map)
    mask_spec = pl.BlockSpec((tile_rows, 1), row_map)
    out_spec = pl.BlockSpec((1, 8, d), lambda c, i: (c, 0, 0))

    cost = pl.CostEstimate(
        flops=int(14 * n_pad * d),
        transcendentals=int(2 * n_pad),
        bytes_accessed=int(2 * n_pad * d * itemsize + n_pad * 4
                           + num_core_splits * 8 * d * 4),
    )

    partials = pl.pallas_call(
        _seq_hint_kernel,
        out_shape=jax.ShapeDtypeStruct((num_core_splits, 8, d), jnp.float32),
        grid_spec=pltpu.PrefetchScalarGridSpec(
            num_scalar_prefetch=0,
            grid=(num_core_splits, tiles_per_split),
            in_specs=[row_spec, row_spec, mask_spec],
            out_specs=out_spec,
        ),
        compiler_params=pltpu.CompilerParams(
            dimension_semantics=("parallel", "arbitrary"),
            vmem_limit_bytes=48 * 1024 * 1024),
        cost_estimate=cost,
    )(s, t, m)

    # Per-column SSE; gamma**2 (per column) and the 1/(count*D) mean applied here.
    col_sse = jnp.sum(partials, axis=(0, 1))                    # (D,)
    g2 = jnp.square(gamma.astype(jnp.float32))
    sse = jnp.sum(col_sse * g2)
    return sse / (count * jnp.float32(d))


def sequence_hint_loss_forward(output_s, student_seq, teacher_seq, gamma, beta,
                               *, tile_rows=1024):
    """Mirrors SequenceHintLoss.forward (use_layer_norm=True path).

    output_s['mask']: (B, H, W) bool, True == padded position (DETR convention).
    student_seq:  {layer_name: (S, B, D)} with S == num_teachers * S_teacher.
    teacher_seq:  list of num_teachers dicts {layer_name: (S_teacher, B, D)}.
    gamma, beta:  shared nn.LayerNorm affine params (beta cancels in the MSE).
    """
    # TODO(synk): ChannelNorm (use_layer_norm=False) branch is not implemented.
    assert 'mask' in output_s, 'requires `return_mask = True` in detr'
    del beta  # LayerNorm bias cancels inside ||LN(s) - LN(t)||^2.
    num_teachers = len(teacher_seq)

    mask = output_s['mask']
    b = mask.shape[0]
    valid = jnp.logical_not(mask.reshape(b, -1).transpose(1, 0))   # (HW, B)
    masks = jnp.split(valid, num_teachers, axis=0)                 # chunk(dim=0)

    loss_dict = {}
    for layer_name, seq_s in student_seq.items():
        chunks = jnp.split(seq_s, num_teachers, axis=0)            # chunk(dim=0)
        layer_loss = jnp.float32(0.0)
        for t_id, (out_s, t_layers) in enumerate(zip(chunks, teacher_seq)):
            out_t = t_layers[layer_name]
            s_t, bs, d = out_s.shape
            n_rows = s_t * bs
            if 'encoder' in layer_name:
                row_valid = masks[t_id].reshape(n_rows)
            else:
                row_valid = jnp.ones((n_rows,), jnp.bool_)
            layer_loss = layer_loss + _masked_normed_mse(
                out_s.reshape(n_rows, d), out_t.reshape(n_rows, d),
                row_valid, gamma, tile_rows=tile_rows)
        loss_dict[f'seq_amg_hint_loss.{layer_name}'] = layer_loss
    return loss_dict


def _reference_forward(output_s, student_seq, teacher_seq, gamma, beta):
    """Pure-JAX mirror of the PyTorch forward, for correctness checking."""

    def ln(x):
        x = x.astype(jnp.float32)
        mu = jnp.mean(x, axis=-1, keepdims=True)
        var = jnp.mean((x - mu) ** 2, axis=-1, keepdims=True)
        return (x - mu) / jnp.sqrt(var + _LN_EPS) * gamma + beta

    num_teachers = len(teacher_seq)
    mask = output_s['mask']
    b = mask.shape[0]
    valid = jnp.logical_not(mask.reshape(b, -1).transpose(1, 0))
    masks = jnp.split(valid, num_teachers, axis=0)

    out = {}
    for layer_name, seq_s in student_seq.items():
        chunks = jnp.split(seq_s, num_teachers, axis=0)
        layer_loss = jnp.float32(0.0)
        for t_id, (out_s, t_layers) in enumerate(zip(chunks, teacher_seq)):
            sq = (ln(out_s) - ln(t_layers[layer_name])) ** 2
            if 'encoder' in layer_name:
                m = masks[t_id][..., None].astype(jnp.float32)
                layer_loss = layer_loss + jnp.sum(sq * m) / (jnp.sum(m) * out_s.shape[-1])
            else:
                layer_loss = layer_loss + jnp.mean(sq)
        out[f'seq_amg_hint_loss.{layer_name}'] = layer_loss
    return out


if __name__ == "__main__":
    key = jax.random.PRNGKey(0)
    num_teachers = 2
    B, D = 2, 32
    S_t = 8                      # per-teacher encoder sequence length
    Q_t = 8                      # per-teacher decoder query length
    H = W = 4                    # H * W == num_teachers * S_t

    ks = jax.random.split(key, 9)
    enc_s = jax.random.normal(ks[0], (num_teachers * S_t, B, D), jnp.float32)
    dec_s = jax.random.normal(ks[1], (num_teachers * Q_t, B, D), jnp.float32)
    enc_t = [jax.random.normal(ks[2 + i], (S_t, B, D), jnp.float32)
             for i in range(num_teachers)]
    dec_t = [jax.random.normal(ks[4 + i], (Q_t, B, D), jnp.float32)
             for i in range(num_teachers)]

    gamma = 1.0 + 0.1 * jax.random.normal(ks[6], (D,), jnp.float32)
    beta = 0.1 * jax.random.normal(ks[7], (D,), jnp.float32)

    # DETR-style padding mask (True == padded); guarantee at least one valid
    # position in each teacher chunk so the encoder MSE denominators are > 0.
    pad_mask = jax.random.uniform(ks[8], (B, H * W)) > 0.7
    pad_mask = pad_mask.at[:, 0].set(False).at[:, S_t].set(False)
    pad_mask = pad_mask.reshape(B, H, W)

    output_s = {'mask': pad_mask}
    student_seq = {'encoder_layer0': enc_s, 'decoder_layer0': dec_s}
    teacher_seq = [{'encoder_layer0': enc_t[i], 'decoder_layer0': dec_t[i]}
                   for i in range(num_teachers)]

    loss_dict = sequence_hint_loss_forward(
        output_s, student_seq, teacher_seq, gamma, beta)
    loss_dict = jax.block_until_ready(loss_dict)

    ref_dict = _reference_forward(output_s, student_seq, teacher_seq, gamma, beta)
    for name, value in loss_dict.items():
        ref = ref_dict[name]
        assert jnp.allclose(value, ref, rtol=1e-5, atol=1e-5), (name, value, ref)

    print("KERNEL_OK")
</pallas_src>

<mosaic_0001>
module attributes {stable_mosaic.version = 11 : i64} {
  func.func @_seq_hint_kernel(%arg0: i32, %arg1: i32, %arg2: memref<8x32xf32, #tpu.memory_space<vmem>>, %arg3: memref<8x32xf32, #tpu.memory_space<vmem>>, %arg4: memref<8x1xf32, #tpu.memory_space<vmem>>, %arg5: memref<1x8x32xf32, #tpu.memory_space<vmem>>) attributes {dimension_semantics = [#tpu.dimension_semantics<parallel>, #tpu.dimension_semantics<arbitrary>], iteration_bounds = array<i64: 2, 1>, scalar_prefetch = 0 : i64, scratch_operands = 0 : i64, tpu.core_type = #tpu.core_type<tc>, window_params = [{transform_indices = @transform_0, window_bounds = array<i64: 8, 32>}, {transform_indices = @transform_1, window_bounds = array<i64: 8, 32>}, {transform_indices = @transform_2, window_bounds = array<i64: 8, 1>}, {transform_indices = @transform_3, window_bounds = array<i64: 1, 8, 32>}]} {
    %c0 = arith.constant 0 : index
    %c0_0 = arith.constant 0 : index
    %0 = vector.load %arg2[%c0, %c0_0] : memref<8x32xf32, #tpu.memory_space<vmem>>, vector<8x32xf32>
    %cst = arith.constant dense<0.000000e+00> : vector<8xf32>
    %1 = vector.multi_reduction <add>, %0, %cst [1] : vector<8x32xf32> to vector<8xf32>
    %2 = vector.shape_cast %1 : vector<8xf32> to vector<8x1xf32>
    %cst_1 = arith.constant 3.200000e+01 : f32
    %3 = vector.broadcast %cst_1 : f32 to vector<8x1xf32>
    %4 = arith.divf %2, %3 : vector<8x1xf32>
    %5 = vector.broadcast %4 : vector<8x1xf32> to vector<8x32xf32>
    %6 = arith.subf %0, %5 : vector<8x32xf32>
    %7 = arith.mulf %6, %6 : vector<8x32xf32>
    %cst_2 = arith.constant dense<0.000000e+00> : vector<8xf32>
    %8 = vector.multi_reduction <add>, %7, %cst_2 [1] : vector<8x32xf32> to vector<8xf32>
    %9 = vector.shape_cast %8 : vector<8xf32> to vector<8x1xf32>
    %cst_3 = arith.constant 3.200000e+01 : f32
    %10 = vector.broadcast %cst_3 : f32 to vector<8x1xf32>
    %11 = arith.divf %9, %10 : vector<8x1xf32>
    %cst_4 = arith.constant 9.99999974E-6 : f32
    %12 = vector.broadcast %cst_4 : f32 to vector<8x1xf32>
    %13 = arith.addf %11, %12 : vector<8x1xf32>
    %14 = math.rsqrt %13 : vector<8x1xf32>
    %15 = vector.broadcast %14 : vector<8x1xf32> to vector<8x32xf32>
    %16 = arith.mulf %6, %15 : vector<8x32xf32>
    %c0_5 = arith.constant 0 : index
    %c0_6 = arith.constant 0 : index
    %17 = vector.load %arg3[%c0_5, %c0_6] : memref<8x32xf32, #tpu.memory_space<vmem>>, vector<8x32xf32>
    %cst_7 = arith.constant dense<0.000000e+00> : vector<8xf32>
    %18 = vector.multi_reduction <add>, %17, %cst_7 [1] : vector<8x32xf32> to vector<8xf32>
    %19 = vector.shape_cast %18 : vector<8xf32> to vector<8x1xf32>
    %cst_8 = arith.constant 3.200000e+01 : f32
    %20 = vector.broadcast %cst_8 : f32 to vector<8x1xf32>
    %21 = arith.divf %19, %20 : vector<8x1xf32>
    %22 = vector.broadcast %21 : vector<8x1xf32> to vector<8x32xf32>
    %23 = arith.subf %17, %22 : vector<8x32xf32>
    %24 = arith.mulf %23, %23 : vector<8x32xf32>
    %cst_9 = arith.constant dense<0.000000e+00> : vector<8xf32>
    %25 = vector.multi_reduction <add>, %24, %cst_9 [1] : vector<8x32xf32> to vector<8xf32>
    %26 = vector.shape_cast %25 : vector<8xf32> to vector<8x1xf32>
    %cst_10 = arith.constant 3.200000e+01 : f32
    %27 = vector.broadcast %cst_10 : f32 to vector<8x1xf32>
    %28 = arith.divf %26, %27 : vector<8x1xf32>
    %cst_11 = arith.constant 9.99999974E-6 : f32
    %29 = vector.broadcast %cst_11 : f32 to vector<8x1xf32>
    %30 = arith.addf %28, %29 : vector<8x1xf32>
    %31 = math.rsqrt %30 : vector<8x1xf32>
    %32 = vector.broadcast %31 : vector<8x1xf32> to vector<8x32xf32>
    %33 = arith.mulf %23, %32 : vector<8x32xf32>
    %34 = arith.subf %16, %33 : vector<8x32xf32>
    %35 = arith.mulf %34, %34 : vector<8x32xf32>
    %c0_12 = arith.constant 0 : index
    %c0_13 = arith.constant 0 : index
    %36 = vector.load %arg4[%c0_12, %c0_13] : memref<8x1xf32, #tpu.memory_space<vmem>>, vector<8x1xf32>
    %37 = vector.broadcast %36 : vector<8x1xf32> to vector<8x32xf32>
    %38 = arith.mulf %35, %37 : vector<8x32xf32>
    %39 = vector.shape_cast %38 : vector<8x32xf32> to vector<1x8x32xf32>
    %cst_14 = arith.constant dense<0.000000e+00> : vector<8x32xf32>
    %40 = vector.multi_reduction <add>, %39, %cst_14 [0] : vector<1x8x32xf32> to vector<8x32xf32>
    %c0_i32 = arith.constant 0 : i32
    %41 = arith.cmpi eq, %arg1, %c0_i32 : i32
    %42 = arith.extui %41 : i1 to i32
    %c0_i32_15 = arith.constant 0 : i32
    %43 = arith.cmpi ne, %42, %c0_i32_15 : i32
    scf.if %43 {
      %cst_22 = arith.constant 0.000000e+00 : f32
      %48 = vector.broadcast %cst_22 : f32 to vector<1x8x32xf32>
      %c0_23 = arith.constant 0 : index
      %c0_24 = arith.constant 0 : index
      %c0_25 = arith.constant 0 : index
      %49 = vector.load %arg5[%c0_23, %c0_24, %c0_25] : memref<1x8x32xf32, #tpu.memory_space<vmem>>, vector<1x8x32xf32>
      tpu.vector_store %arg5[%c0_23, %c0_24, %c0_25], %48 {strides = array<i32>} : memref<1x8x32xf32, #tpu.memory_space<vmem>>, vector<1x8x32xf32>,
    } else {
    }
    %c0_16 = arith.constant 0 : index
    %c0_17 = arith.constant 0 : index
    %c0_18 = arith.constant 0 : index
    %44 = vector.load %arg5[%c0_16, %c0_17, %c0_18] : memref<1x8x32xf32, #tpu.memory_space<vmem>>, vector<1x8x32xf32>
    %45 = vector.shape_cast %40 : vector<8x32xf32> to vector<1x8x32xf32>
    %46 = arith.addf %44, %45 : vector<1x8x32xf32>
    %c0_19 = arith.constant 0 : index
    %c0_20 = arith.constant 0 : index
    %c0_21 = arith.constant 0 : index
    %47 = vector.load %arg5[%c0_19, %c0_20, %c0_21] : memref<1x8x32xf32, #tpu.memory_space<vmem>>, vector<1x8x32xf32>
    tpu.vector_store %arg5[%c0_19, %c0_20, %c0_21], %46 {strides = array<i32>} : memref<1x8x32xf32, #tpu.memory_space<vmem>>, vector<1x8x32xf32>,
    return
  }
  func.func @transform_0(%arg0: i32, %arg1: i32) -> (i32, i32) {
    %c1_i32 = arith.constant 1 : i32
    %0 = arith.muli %arg0, %c1_i32 : i32
    %1 = arith.addi %0, %arg1 : i32
    %c0_i32 = arith.constant 0 : i32
    %c0_i32_0 = arith.constant 0 : i32
    return %1, %c0_i32 : i32, i32
  }
  func.func @transform_1(%arg0: i32, %arg1: i32) -> (i32, i32) {
    %c1_i32 = arith.constant 1 : i32
    %0 = arith.muli %arg0, %c1_i32 : i32
    %1 = arith.addi %0, %arg1 : i32
    %c0_i32 = arith.constant 0 : i32
    %c0_i32_0 = arith.constant 0 : i32
    return %1, %c0_i32 : i32, i32
  }
  func.func @transform_2(%arg0: i32, %arg1: i32) -> (i32, i32) {
    %c1_i32 = arith.constant 1 : i32
    %0 = arith.muli %arg0, %c1_i32 : i32
    %1 = arith.addi %0, %arg1 : i32
    %c0_i32 = arith.constant 0 : i32
    %c0_i32_0 = arith.constant 0 : i32
    return %1, %c0_i32 : i32, i32
  }
  func.func @transform_3(%arg0: i32, %arg1: i32) -> (i32, i32, i32) {
    %c0_i32 = arith.constant 0 : i32
    %c0_i32_0 = arith.constant 0 : i32
    %c0_i32_1 = arith.constant 0 : i32
    return %arg0, %c0_i32, %c0_i32_0 : i32, i32, i32
  }
}

</mosaic_0001>

<llo_original>
// kernel: tpu_custom_call.1
$region0: #{tpu_custom_call.1}
  #allocation0 [shape = 'u32[]', space=smem, size = 0x4, offset = 0x4, fixed_abs, tag = 'smem constant byte address 0x4 - core index']
  #allocation1 [shape = 'u32[72,128]{1,0:T(1,128)}', space=vmem, size = 0x9000, scoped, tag = 'internal scratch']
  %s0 = inlined_call_operand.vmem [shape: f32[16,32], index: 0, kind: input, shape index: {}]
  %s1 = inlined_call_operand.hbm [shape: f32[16,32], index: 1, kind: input, shape index: {}]
  %s2 = inlined_call_operand.vmem [shape: f32[16,1], index: 2, kind: input, shape index: {}]
  %s3 = inlined_call_operand.hbm [shape: f32[2,8,32], index: 3, kind: output, shape index: {}]
  %s4 = sld [smem:[#allocation0]]
  $region53: #{tpu_custom_call.1} parent=0
    _
  %s6 = ssub.s32 1, %s4
  %s7 = scalar_select 0, %s6, %s4
  $region1: #{tpu_custom_call.1} parent=0
    #allocation2 [shape = 'u8[8192]{0}', space=vmem, size = 0x2000, scoped, tag = 'input window, operand 1']
    #allocation3 [shape = 's32[2]{0}', space=sflag, size = 0x8, scoped, tag = 'scoped memory for tpu_custom_call.1']
    #allocation4 [shape = 's32[2]{0}', space=sflag, size = 0x8, scoped, tag = 'scoped memory for tpu_custom_call.1']
    #allocation5 [shape = 'u8[8192]{0}', space=vmem, size = 0x2000, scoped, tag = 'output window, operand 0']
    %8 = vsyncpa [#allocation3], 0
    %s9 = scalar_lea.sflag [#allocation3], 1
    %10 = vsyncpa %s9, 0
    %11 = vsyncpa [#allocation4], 0
    %s12 = scalar_lea.sflag [#allocation4], 1
    %13 = vsyncpa %s12, 0
    loop: start=0, step=1, limit=4
    $region2: #{tpu_custom_call.1} parent=1 // loop_pre_header
      _
    $region3: #{tpu_custom_call.1} parent=1 // loop_header
      %s15 = sphi 0, %s19
      %p16 = scmp.ge.s32.totalorder %s15, 4
      %s22 = sphi 0, %s34
      %s23 = sphi 0, %s30
      %s24 = sphi 0, %s22
      %s25 = sphi 0, %s23
      %s26 = sphi 0, %s24
      %s27 = sphi 0, %s25
      %s39 = sphi 0, %s41
      %s42 = sphi 0, %s39
      %s43 = sphi 0, %s42
      %s59 = sphi 0, %s43
      %s67 = sphi 0, %s69
      %s70 = sphi 0, %s67
      %s71 = sphi 0, %s70
      %s87 = sphi 0, %s71
      %s95 = sphi 0, %s97
      %s98 = sphi 0, %s95
      %s99 = sphi 0, %s98
      %s115 = sphi 0, %s99
      %s121 = sphi 0, %s123
      %s124 = sphi 0, %s121
      %s125 = sphi 0, %s124
      %s141 = sphi 0, %s125
    $region4: #{tpu_custom_call.1} parent=1 // loop_header_branch
      %18 = sbr.rel (%p16) target = $region8
    $region5: #{tpu_custom_call.1} parent=1 // loop_body
      %s20 = ssub.s32 %s15, 1
      %s21 = ssub.s32 %s15, 2
      %s28 = sadd.s32 1, %s23
      %p29 = scmp.ge.s32.totalorder %s28, 1
      %s30 = scalar_select %p29, 0, %s28
      %s31 = sadd.s32 1, %s22
      %s32 = scalar_select %p29, %s31, %s22
      %p33 = scmp.ge.s32.totalorder %s32, 2
      %s34 = scalar_select %p33, 0, %s32
      %s35 = sadd.s32 %s22, %s23
      %s36 = sadd.s32 %s34, %s30
      %s37 = ssub.s32 %s35, %s36
      %p38 = scmp.eq.s32.totalorder %s37, 0
      %s40 = sadd.s32 %s39, 1
      %s41 = scalar_select %p38, %s39, %s40
      %p44 = pneg %p38
      %p45 = scmp.eq.s32.totalorder %s15, 1
      %p46 = por %p44, %p45
      %p47 = scmp.ne.s32.totalorder %s39, %s42
      %p48 = scmp.eq.s32.totalorder %s15, 0
      %p49 = por %p47, %p48
      %p50 = scmp.ne.s32.totalorder %s39, %s42
      %p51 = scmp.eq.s32.totalorder %s20, 1
      %p52 = por %p50, %p51
      %p53 = scmp.ne.s32.totalorder %s42, %s43
      %p54 = scmp.eq.s32.totalorder %s20, 0
      %p55 = por %p53, %p54
      %p56 = scmp.ne.s32.totalorder %s42, %s43
      %p57 = scmp.eq.s32.totalorder %s21, 1
      %p58 = por %p56, %p57
      %p60 = scmp.ne.s32.totalorder %s43, %s59
      %p61 = scmp.eq.s32.totalorder %s21, 0
      %p62 = por %p60, %p61
      %s63 = sadd.s32 %s22, %s23
      %s64 = sadd.s32 %s34, %s30
      %s65 = ssub.s32 %s63, %s64
      %p66 = scmp.eq.s32.totalorder %s65, 0
      %s68 = sadd.s32 %s67, 1
      %s69 = scalar_select %p66, %s67, %s68
      %p72 = pneg %p66
      %p73 = scmp.eq.s32.totalorder %s15, 1
      %p74 = por %p72, %p73
      %p75 = scmp.ne.s32.totalorder %s67, %s70
      %p76 = scmp.eq.s32.totalorder %s15, 0
      %p77 = por %p75, %p76
      %p78 = scmp.ne.s32.totalorder %s67, %s70
      %p79 = scmp.eq.s32.totalorder %s20, 1
      %p80 = por %p78, %p79
      %p81 = scmp.ne.s32.totalorder %s70, %s71
      %p82 = scmp.eq.s32.totalorder %s20, 0
      %p83 = por %p81, %p82
      %p84 = scmp.ne.s32.totalorder %s70, %s71
      %p85 = scmp.eq.s32.totalorder %s21, 1
      %p86 = por %p84, %p85
      %p88 = scmp.ne.s32.totalorder %s71, %s87
      %p89 = scmp.eq.s32.totalorder %s21, 0
      %p90 = por %p88, %p89
      %s91 = sadd.s32 %s22, %s23
      %s92 = sadd.s32 %s34, %s30
      %s93 = ssub.s32 %s91, %s92
      %p94 = scmp.eq.s32.totalorder %s93, 0
      %s96 = sadd.s32 %s95, 1
      %s97 = scalar_select %p94, %s95, %s96
      %p100 = pneg %p94
      %p101 = scmp.eq.s32.totalorder %s15, 1
      %p102 = por %p100, %p101
      %p103 = scmp.ne.s32.totalorder %s95, %s98
      %p104 = scmp.eq.s32.totalorder %s15, 0
      %p105 = por %p103, %p104
      %p106 = scmp.ne.s32.totalorder %s95, %s98
      %p107 = scmp.eq.s32.totalorder %s20, 1
      %p108 = por %p106, %p107
      %p109 = scmp.ne.s32.totalorder %s98, %s99
      %p110 = scmp.eq.s32.totalorder %s20, 0
      %p111 = por %p109, %p110
      %p112 = scmp.ne.s32.totalorder %s98, %s99
      %p113 = scmp.eq.s32.totalorder %s21, 1
      %p114 = por %p112, %p113
      %p116 = scmp.ne.s32.totalorder %s99, %s115
      %p117 = scmp.eq.s32.totalorder %s21, 0
      %p118 = por %p116, %p117
      %s119 = ssub.s32 %s22, %s34
      %p120 = scmp.eq.s32.totalorder %s119, 0
      %s122 = sadd.s32 %s121, 1
      %s123 = scalar_select %p120, %s121, %s122
      %p126 = pneg %p120
      %p127 = scmp.eq.s32.totalorder %s15, 1
      %p128 = por %p126, %p127
      %p129 = scmp.ne.s32.totalorder %s121, %s124
      %p130 = scmp.eq.s32.totalorder %s15, 0
      %p131 = por %p129, %p130
      %p132 = scmp.ne.s32.totalorder %s121, %s124
      %p133 = scmp.eq.s32.totalorder %s20, 1
      %p134 = por %p132, %p133
      %p135 = scmp.ne.s32.totalorder %s124, %s125
      %p136 = scmp.eq.s32.totalorder %s20, 0
      %p137 = por %p135, %p136
      %p138 = scmp.ne.s32.totalorder %s124, %s125
      %p139 = scmp.eq.s32.totalorder %s21, 1
      %p140 = por %p138, %p139
      %p142 = scmp.ne.s32.totalorder %s125, %s141
      %p143 = scmp.eq.s32.totalorder %s21, 0
      %p144 = por %p142, %p143
      %p145 = scmp.le.s32.totalorder 1, %s15
      %p146 = scmp.lt.s32.totalorder %s15, 3
      %p147 = pnand %p145, %p146
      %p148 = pneg %p147
      // Predicated region
      $region9: #{tpu_custom_call.1} parent=5 // pred_check
        _
      $region10: #{tpu_custom_call.1} parent=5 // pred_check_branch
        %150 = sbr.rel (%p147) target = $region12
      $region11: #{tpu_custom_call.1} parent=5 // pred_region
        %s151 = ssub.s32 %s15, 1
      $region12: #{tpu_custom_call.1} parent=5 // pred_fallthru
        _
      %p152 = scmp.lt.s32.totalorder %s15, 2
      // Predicated region
      $region13: #{tpu_custom_call.1} parent=5 // pred_check
        %p153 = pneg %p152
      $region14: #{tpu_custom_call.1} parent=5 // pred_check_branch
        %155 = sbr.rel (%p153) target = $region16
      $region15: #{tpu_custom_call.1} parent=5 // pred_region
        // Predicated region
        $region17: #{tpu_custom_call.1} parent=15 // pred_check
          %p156 = pneg %p49
        $region18: #{tpu_custom_call.1} parent=15 // pred_check_branch
          %158 = sbr.rel (%p156) target = $region20
        $region19: #{tpu_custom_call.1} parent=15 // pred_region
          %s159 = sadd.s32 %s22, %s23
          %p160 = scmp.lt.s32.totalorder %s159, 1
          %s161 = scalar_select %p160, %s159, 1
          %s162 = smul.addr %s161, 8
          %s163 = scalar_lea.vmem %s0, %s162
          %s164 = sadd.s32 %s22, %s23
        $region20: #{tpu_custom_call.1} parent=15 // pred_fallthru
          _
        // Predicated region
        $region21: #{tpu_custom_call.1} parent=15 // pred_check
          %p165 = pneg %p77
        $region22: #{tpu_custom_call.1} parent=15 // pred_check_branch
          %167 = sbr.rel (%p165) target = $region24
        $region23: #{tpu_custom_call.1} parent=15 // pred_region
          %s168 = sand.u32 %s67, 1
          %s169 = scalar_lea.sflag [#allocation3], %s168
          %s170 = sand.u32 %s67, 1
          %s171 = smul.addr %s170, 8
          %s172 = scalar_lea.vmem [#allocation2], %s171
          %s173 = sadd.s32 %s22, %s23
          %175 = vsyncadd %s169, 0
          %s176 = smul.addr %s173, 8
          %s177 = scalar_lea.hbm %s1, %s176
          %s179 = sshll.u32 %s177, 4
          %s180 = int_to_ptr.hbm [resolvable:$true] %s179
          %s181 = sshll.u32 %s172, 4
          %s182 = int_to_ptr.vmem [resolvable:$true] %s181
          %184 = dma.hbm_to_vmem [thread:$0]  %s180, 128, %s182, %s169
        $region24: #{tpu_custom_call.1} parent=15 // pred_fallthru
          _
        // Predicated region
        $region25: #{tpu_custom_call.1} parent=15 // pred_check
          %p185 = pneg %p105
        $region26: #{tpu_custom_call.1} parent=15 // pred_check_branch
          %187 = sbr.rel (%p185) target = $region28
        $region27: #{tpu_custom_call.1} parent=15 // pred_region
          %s188 = sadd.s32 %s22, %s23
          %p189 = scmp.lt.s32.totalorder %s188, 1
          %s190 = scalar_select %p189, %s188, 1
          %s191 = smul.addr %s190, 8
          %s192 = scalar_lea.vmem %s2, %s191
          %s193 = sadd.s32 %s22, %s23
        $region28: #{tpu_custom_call.1} parent=15 // pred_fallthru
          _
      $region16: #{tpu_custom_call.1} parent=5 // pred_fallthru
        _
      %p194 = scmp.le.s32.totalorder 1, %s15
      %p195 = scmp.lt.s32.totalorder %s15, 3
      %p196 = pnand %p194, %p195
      %p197 = pneg %p196
      // Predicated region
      $region29: #{tpu_custom_call.1} parent=5 // pred_check
        _
      $region30: #{tpu_custom_call.1} parent=5 // pred_check_branch
        %199 = sbr.rel (%p196) target = $region32
      $region31: #{tpu_custom_call.1} parent=5 // pred_region
        %s200 = ssub.s32 %s15, 1
        %s201 = sand.u32 %s70, 1
        %s202 = scalar_lea.sflag [#allocation3], %s201
        %s203 = sand.u32 %s70, 1
        %s204 = smul.addr %s203, 8
        %s205 = scalar_lea.vmem [#allocation2], %s204
        // Predicated region
        $region33: #{tpu_custom_call.1} parent=31 // pred_check
          %p206 = pneg %p83
        $region34: #{tpu_custom_call.1} parent=31 // pred_check_branch
          %208 = sbr.rel (%p206) target = $region36
        $region35: #{tpu_custom_call.1} parent=31 // pred_region
          %210 = dma.done %s202, 128
        $region36: #{tpu_custom_call.1} parent=31 // pred_fallthru
          _
        %s211 = sadd.s32 %s24, %s25
        %p212 = scmp.lt.s32.totalorder %s211, 1
        %s213 = scalar_select %p212, %s211, 1
        %s214 = smul.addr %s213, 8
        %s215 = scalar_lea.vmem %s0, %s214
        %p216 = pneg %p55
        %p217 = pneg %p52
        %s218 = sand.u32 %s70, 1
        %s219 = scalar_lea.sflag [#allocation3], %s218
        %s220 = sand.u32 %s70, 1
        %s221 = smul.addr %s220, 8
        %s222 = scalar_lea.vmem [#allocation2], %s221
        %p223 = pneg %p83
        %p224 = pneg %p80
        %s225 = sadd.s32 %s24, %s25
        %p226 = scmp.lt.s32.totalorder %s225, 1
        %s227 = scalar_select %p226, %s225, 1
        %s228 = smul.addr %s227, 8
        %s229 = scalar_lea.vmem %s2, %s228
        %p230 = pneg %p111
        %p231 = pneg %p108
        %p232 = pneg %p137
        %p233 = pneg %p134
        %s234 = sand.u32 %s124, 1
        %s235 = scalar_lea.sflag [#allocation4], %s234
        %s236 = sand.u32 %s124, 1
        %s237 = smul.addr %s236, 8
        %s238 = scalar_lea.vmem [#allocation5], %s237
        %s239 = sadd.s32 %s24, %s25
        %p240 = scmp.lt.s32.totalorder %s239, 1
        %s241 = scalar_select %p240, %s239, 1
        %s242 = smul.addr %s241, 8
        %s243 = scalar_lea.vmem %s0, %s242
        %s244 = sadd.s32 %s24, %s25
        %s245 = sadd.s32 %s24, %s25
        %s246 = sadd.s32 %s24, %s25
        %p247 = scmp.lt.s32.totalorder %s246, 1
        %s248 = scalar_select %p247, %s246, 1
        %s249 = smul.addr %s248, 8
        %s250 = scalar_lea.vmem %s2, %s249
        %s251 = sadd.s32 %s24, %s25
        %v252 = vld [vmem:[%s243] sm:$0xff]
        %vm253 = vcmask 261120
        %v254 = vsel %vm253, %v252, 0.0
        %255 = vadd.xlane.f32.xlu0 %v254
        %v256 = vpop.xlane.xlu0 %255
        %v257 = vrcp.pop 32.0
        %v258 = vmul.f32 32.0, %v257
        %v259 = vsub.f32 1.0, %v258
        %v260 = vmul.f32 %v257, %v259
        %v261 = vadd.f32 %v257, %v260
        %vm262 = vweird.f32 %v257
        %v263 = vsel %vm262, %v257, %v261
        %v264 = vmul.f32 %v256, %v263
        %v265 = vsub.f32 %v252, %v264
        %v266 = vmul.f32 %v265, %v265
        %v267 = vsel %vm253, %v266, 0.0
        %268 = vadd.xlane.f32.xlu0 %v267
        %v269 = vpop.xlane.xlu0 %268
        %v270 = vmul.f32 %v269, %v263
        %v271 = vadd.f32 %v270, 1e-05
        %v272 = vrsqrt.pop %v271
        %v273 = vmul.f32 %v272, %v271
        %v274 = vmul.f32 %v273, %v272
        %v275 = vmul.f32 0.5, %v274
        %v276 = vsub.f32 1.5, %v275
        %v277 = vmul.f32 %v272, %v276
        %vm278 = vweird.f32 %v271
        %vm279 = vweird.f32 %v272
        %vm280 = vmor %vm278, %vm279
        %v281 = vsel %vm280, %v272, %v277
        %v282 = vmul.f32 %v265, %v281
        %v283 = vld [vmem:[%s205] sm:$0xff]
        %v284 = vsel %vm253, %v283, 0.0
        %285 = vadd.xlane.f32.xlu0 %v284
        %v286 = vpop.xlane.xlu0 %285
        %v287 = vmul.f32 %v286, %v263
        %v288 = vsub.f32 %v283, %v287
        %v289 = vmul.f32 %v288, %v288
        %v290 = vsel %vm253, %v289, 0.0
        %291 = vadd.xlane.f32.xlu0 %v290
        %v292 = vpop.xlane.xlu0 %291
        %v293 = vmul.f32 %v292, %v263
        %v294 = vadd.f32 %v293, 1e-05
        %v295 = vrsqrt.pop %v294
        %v296 = vmul.f32 %v295, %v294
        %v297 = vmul.f32 %v296, %v295
        %v298 = vmul.f32 0.5, %v297
        %v299 = vsub.f32 1.5, %v298
        %v300 = vmul.f32 %v295, %v299
        %vm301 = vweird.f32 %v294
        %vm302 = vweird.f32 %v295
        %vm303 = vmor %vm301, %vm302
        %v304 = vsel %vm303, %v295, %v300
        %v305 = vmul.f32 %v288, %v304
        %v306 = vsub.f32 %v282, %v305
        %v307 = vmul.f32 %v306, %v306
        %v308 = vld [vmem:[%s250] sm:$0xff]
        %310 = vset.pattern.permute.xlu0 0
        %311 = vperm.xlu0 %310, %v308
        %v312 = vpop.permute.xlu0 %311
        %v314 = vmul.f32 %v307, %v312
        %v315 = vadd.f32 %v314, 0.0
        %p316 = scmp.eq.s32.totalorder %s25, 0
        // Predicated region
        $region37: #{tpu_custom_call.1} parent=31 // pred_check
          %p317 = pneg %p316
        $region38: #{tpu_custom_call.1} parent=31 // pred_check_branch
          %319 = sbr.rel (%p317) target = $region40
        $region39: #{tpu_custom_call.1} parent=31 // pred_region
          %320 = vst.msk [vmem:[%s238] sm:$0xff] %vm253, 0.0
        $region40: #{tpu_custom_call.1} parent=31 // pred_fallthru
          _
        %v321 = vld [vmem:[%s238] sm:$0xff]
        %v322 = vadd.f32 %v321, %v315
        %323 = vst.msk [vmem:[%s238] sm:$0xff] %vm253, %v322
        %s324 = sand.u32 %s124, 1
        %s325 = scalar_lea.sflag [#allocation4], %s324
        %s326 = sand.u32 %s124, 1
        %s327 = smul.addr %s326, 8
        %s328 = scalar_lea.vmem [#allocation5], %s327
        // Predicated region
        $region41: #{tpu_custom_call.1} parent=31 // pred_check
          %p329 = pneg %p134
        $region42: #{tpu_custom_call.1} parent=31 // pred_check_branch
          %331 = sbr.rel (%p329) target = $region44
        $region43: #{tpu_custom_call.1} parent=31 // pred_region
          %333 = vsyncadd %s325, 0
          %s334 = smul.addr %s24, 8
          %s335 = scalar_lea.hbm %s3, %s334
          %s337 = sshll.u32 %s328, 4
          %s338 = int_to_ptr.vmem [resolvable:$true] %s337
          %s339 = sshll.u32 %s335, 4
          %s340 = int_to_ptr.hbm [resolvable:$true] %s339
          %342 = dma.vmem_to_hbm [thread:$0]  %s338, 128, %s340, %s325
        $region44: #{tpu_custom_call.1} parent=31 // pred_fallthru
          _
      $region32: #{tpu_custom_call.1} parent=5 // pred_fallthru
        _
      %p343 = scmp.le.s32.totalorder 2, %s15
      // Predicated region
      $region45: #{tpu_custom_call.1} parent=5 // pred_check
        %p344 = pneg %p343
      $region46: #{tpu_custom_call.1} parent=5 // pred_check_branch
        %346 = sbr.rel (%p344) target = $region48
      $region47: #{tpu_custom_call.1} parent=5 // pred_region
        %s347 = ssub.s32 %s15, 2
        // Predicated region
        $region49: #{tpu_custom_call.1} parent=47 // pred_check
          %p348 = pneg %p140
        $region50: #{tpu_custom_call.1} parent=47 // pred_check_branch
          %350 = sbr.rel (%p348) target = $region52
        $region51: #{tpu_custom_call.1} parent=47 // pred_region
          %s351 = sand.u32 %s125, 1
          %s352 = scalar_lea.sflag [#allocation4], %s351
          %s353 = sand.u32 %s125, 1
          %s354 = smul.addr %s353, 8
          %s355 = scalar_lea.vmem [#allocation5], %s354
          %357 = dma.done %s352, 128
        $region52: #{tpu_custom_call.1} parent=47 // pred_fallthru
          _
      $region48: #{tpu_custom_call.1} parent=5 // pred_fallthru
        _
    $region6: #{tpu_custom_call.1} parent=1 // loop_footer
      %s19 = sadd.s32 1, %s15
    $region7: #{tpu_custom_call.1} parent=1 // loop_footer_branch
      %14 = sbr.rel target = $region3
    $region8: #{tpu_custom_call.1} parent=1 // loop_exit
      _
    %358 = vsyncpa [#allocation3], 1
    %s359 = scalar_lea.sflag [#allocation3], 1
    %360 = vsyncpa %s359, 1
    %361 = vsyncpa [#allocation4], 1
    %s362 = scalar_lea.sflag [#allocation4], 1
    %363 = vsyncpa %s362, 1

</llo_original>
